<compile_context>
chip_gen: v7x
topology: tpu7x:2x2x1
jax: 0.10.0
libtpu: 0.0.40
codegen_flags: <defaults>
</compile_context>

<pallas_src>
import jax
import jax.numpy as jnp
import numpy as np
from jax import lax
from jax.experimental import pallas as pl
from jax.experimental.pallas import tpu as pltpu


_VMEM_LIMIT_BYTES = 32 * 1024 * 1024  # safe on v5e/v6e (128 MiB) and v7x (64 MiB)


def _round_up(x, m):
    return ((x + m - 1) // m) * m


def _pick_rows(n_rows, row_bytes, budget_bytes, cap):
    """Rows per tile: multiple of 8, <= cap, roughly within budget_bytes."""
    rows = max(8, budget_bytes // max(1, row_bytes))
    rows = min(rows, cap, _round_up(n_rows, 8))
    rows = max(8, (rows // 8) * 8)
    return int(rows)


# ----------------------------------------------------------------------------
# pos=None fast path: contiguous streaming copy (+ scale / l2norm).
# ----------------------------------------------------------------------------
def _make_stream_kernel(scale, l2norm_embed):
    def kernel(emb_ref, out_ref):
        if l2norm_embed:
            v = emb_ref[...].astype(jnp.float32)
            if scale != 1.0:
                v = v * scale
            sumsq = jnp.sum(v * v, axis=-1, keepdims=True)
            v = v * lax.rsqrt(jnp.maximum(sumsq, 1e-24))
        else:
            # Stay in the table dtype (bf16-friendly on v6e/v7x).
            v = emb_ref[...] * jnp.asarray(scale, emb_ref.dtype)
        out_ref[...] = v.astype(out_ref.dtype)

    return kernel


def _stream_path(emb_table, seq_len, scale, l2norm_embed):
    max_seq_len, dim = emb_table.shape
    itemsize = jnp.dtype(emb_table.dtype).itemsize
    tq = _pick_rows(seq_len, dim * itemsize, budget_bytes=4 << 20, cap=512)
    grid = (pl.cdiv(seq_len, tq),)

    bytes_accessed = seq_len * dim * itemsize * 2
    flops = seq_len * dim * (4 if l2norm_embed else 1)
    transcendentals = seq_len if l2norm_embed else 0

    return pl.pallas_call(
        _make_stream_kernel(scale, l2norm_embed),
        out_shape=jax.ShapeDtypeStruct((seq_len, dim), emb_table.dtype),
        grid=grid,
        in_specs=[pl.BlockSpec((tq, dim), lambda i: (i, 0))],
        out_specs=pl.BlockSpec((tq, dim), lambda i: (i, 0)),
        compiler_params=pltpu.CompilerParams(
            dimension_semantics=("parallel",),
            vmem_limit_bytes=_VMEM_LIMIT_BYTES,
        ),
        cost_estimate=pl.CostEstimate(
            flops=flops,
            transcendentals=transcendentals,
            bytes_accessed=bytes_accessed,
        ),
    )(emb_table)


# ----------------------------------------------------------------------------
# explicit-pos path: batched one-hot MXU gather over table chunks.
# ----------------------------------------------------------------------------
def _make_gather_kernel(scale, l2norm_embed, tk, max_seq_len):
    needs_k_mask = (max_seq_len % tk) != 0

    def kernel(pos_ref, emb_ref, out_ref, acc_ref):
        k = pl.program_id(1)

        @pl.when(k == 0)
        def _():
            acc_ref[...] = jnp.zeros_like(acc_ref)

        idx = pos_ref[...]  # (TQ, 1) int32
        tq = idx.shape[0]
        cols = k * tk + lax.broadcasted_iota(jnp.int32, (tq, tk), 1)

        chunk = emb_ref[...]  # (TK, dim) in native dtype (MXU-friendly)
        if needs_k_mask:
            # Zero rows of a padded (partial) last table chunk so unspecified
            # padding values (possibly NaN) never contaminate the MXU
            # accumulation (0 * NaN = NaN).
            rows = k * tk + lax.broadcasted_iota(jnp.int32, (tk, 1), 0)
            chunk = jnp.where(rows < max_seq_len, chunk,
                              jnp.zeros((), chunk.dtype))

        one_hot = (idx == cols).astype(chunk.dtype)  # (TQ, TK)
        acc_ref[...] += jnp.dot(one_hot, chunk,
                                preferred_element_type=jnp.float32)

        @pl.when(k == pl.num_programs(1) - 1)
        def _():
            v = acc_ref[...]
            if scale != 1.0:
                v = v * scale
            if l2norm_embed:
                sumsq = jnp.sum(v * v, axis=-1, keepdims=True)
                v = v * lax.rsqrt(jnp.maximum(sumsq, 1e-24))
            out_ref[...] = v.astype(out_ref.dtype)

    return kernel


def _gather_path(emb_table, pos, scale, l2norm_embed):
    max_seq_len, dim = emb_table.shape
    seq_len = pos.shape[0]
    itemsize = jnp.dtype(emb_table.dtype).itemsize

    # TQ rows of f32 accumulator per tile; TK table rows per chunk (whole table
    # resident in VMEM when small enough).
    tq = _pick_rows(seq_len, dim * 4, budget_bytes=1 << 20, cap=256)
    if max_seq_len * dim * itemsize <= (4 << 20):
        tk = max_seq_len
    else:
        tk = _pick_rows(max_seq_len, dim * itemsize, budget_bytes=2 << 20, cap=512)

    nq = pl.cdiv(seq_len, tq)
    nk = pl.cdiv(max_seq_len, tk)

    pos2d = pos.reshape(seq_len, 1).astype(jnp.int32)

    flops = 2 * nq * tq * nk * tk * dim
    bytes_accessed = (nq * nk * tk * dim * itemsize
                      + seq_len * dim * itemsize + seq_len * 4)

    return pl.pallas_call(
        _make_gather_kernel(scale, l2norm_embed, tk, max_seq_len),
        out_shape=jax.ShapeDtypeStruct((seq_len, dim), emb_table.dtype),
        grid=(nq, nk),
        in_specs=[
            pl.BlockSpec((tq, 1), lambda q, k: (q, 0)),     # pos tile (constant over k)
            pl.BlockSpec((tk, dim), lambda q, k: (k, 0)),   # table chunk
        ],
        out_specs=pl.BlockSpec((tq, dim), lambda q, k: (q, 0)),
        scratch_shapes=[pltpu.VMEM((tq, dim), jnp.float32)],
        compiler_params=pltpu.CompilerParams(
            dimension_semantics=("parallel", "arbitrary"),
            vmem_limit_bytes=_VMEM_LIMIT_BYTES,
        ),
        cost_estimate=pl.CostEstimate(
            flops=flops,
            transcendentals=seq_len if l2norm_embed else 0,
            bytes_accessed=bytes_accessed,
        ),
    )(pos2d, emb_table)


# ----------------------------------------------------------------------------
# Public wrapper: AbsolutePositionalEmbedding.forward(x, pos)
# ----------------------------------------------------------------------------
def absolute_positional_embedding(emb_table, x, pos=None, *, l2norm_embed=False):
    """emb_table: (max_seq_len, dim) embedding weight; x contributes x.shape[1]."""
    max_seq_len, dim = emb_table.shape
    seq_len = x.shape[1]
    assert seq_len <= max_seq_len, (
        f"sequence length {seq_len} exceeds max_seq_len {max_seq_len}"
    )
    scale = 1.0 if l2norm_embed else dim ** (-0.5)

    if pos is None:
        return _stream_path(emb_table, seq_len, scale, l2norm_embed)

    pos = jnp.asarray(pos, jnp.int32)
    # TODO(synk): PyTorch's nn.Embedding raises on out-of-range indices; the
    # one-hot gather here silently produces a zero row instead.
    return _gather_path(emb_table, pos, scale, l2norm_embed)


def _reference(emb_table, x, pos=None, *, l2norm_embed=False):
    dim = emb_table.shape[1]
    seq_len = x.shape[1]
    scale = 1.0 if l2norm_embed else dim ** (-0.5)
    if pos is None:
        pos = jnp.arange(seq_len, dtype=jnp.int32)
    pe = emb_table[pos] * scale
    if l2norm_embed:
        norm = jnp.sqrt(jnp.sum(pe * pe, axis=-1, keepdims=True))
        pe = pe / jnp.maximum(norm, 1e-12)
    return pe


if __name__ == "__main__":
    key = jax.random.PRNGKey(0)
    k_emb, k_x, k_pos = jax.random.split(key, 3)

    # Small, TPU-lane-friendly module config: dim=128, max_seq_len=64.
    dim = 128
    max_seq_len = 64
    batch, seq_len, feat = 2, 8, 4

    emb_table = jax.random.normal(k_emb, (max_seq_len, dim), dtype=jnp.float32)
    x = jax.random.normal(k_x, (batch, seq_len, feat), dtype=jnp.float32)
    pos = jax.random.randint(k_pos, (seq_len,), 0, max_seq_len, dtype=jnp.int32)

    for l2 in (False, True):
        # Default path (pos=None): streaming copy kernel.
        out = jax.block_until_ready(
            absolute_positional_embedding(emb_table, x, l2norm_embed=l2))
        ref = _reference(emb_table, x, l2norm_embed=l2)
        np.testing.assert_allclose(np.asarray(out), np.asarray(ref),
                                   rtol=1e-5, atol=1e-6)
        assert out.shape == (seq_len, dim) and out.dtype == emb_table.dtype

        # Explicit-pos path: batched one-hot gather kernel.
        out_p = jax.block_until_ready(
            absolute_positional_embedding(emb_table, x, pos=pos, l2norm_embed=l2))
        ref_p = _reference(emb_table, x, pos=pos, l2norm_embed=l2)
        np.testing.assert_allclose(np.asarray(out_p), np.asarray(ref_p),
                                   rtol=1e-5, atol=1e-6)
        assert out_p.shape == (seq_len, dim) and out_p.dtype == emb_table.dtype

    print("KERNEL_OK")
</pallas_src>

<mosaic_0001>
module attributes {stable_mosaic.version = 11 : i64} {
  func.func @kernel(%arg0: i32, %arg1: memref<8x128xf32, #tpu.memory_space<vmem>>, %arg2: memref<8x128xf32, #tpu.memory_space<vmem>>) attributes {dimension_semantics = [#tpu.dimension_semantics<parallel>], iteration_bounds = array<i64: 1>, scalar_prefetch = 0 : i64, scratch_operands = 0 : i64, tpu.core_type = #tpu.core_type<tc>, window_params = [{transform_indices = @transform_0, window_bounds = array<i64: 8, 128>}, {transform_indices = @transform_1, window_bounds = array<i64: 8, 128>}]} {
    %c0 = arith.constant 0 : index
    %c0_0 = arith.constant 0 : index
    %0 = vector.load %arg1[%c0, %c0_0] : memref<8x128xf32, #tpu.memory_space<vmem>>, vector<8x128xf32>
    %cst = arith.constant 0.0883883461 : f32
    %1 = vector.broadcast %cst : f32 to vector<8x128xf32>
    %2 = arith.mulf %0, %1 : vector<8x128xf32>
    %c0_1 = arith.constant 0 : index
    %c0_2 = arith.constant 0 : index
    %3 = vector.load %arg2[%c0_1, %c0_2] : memref<8x128xf32, #tpu.memory_space<vmem>>, vector<8x128xf32>
    tpu.vector_store %arg2[%c0_1, %c0_2], %2 {strides = array<i32>} : memref<8x128xf32, #tpu.memory_space<vmem>>, vector<8x128xf32>,
    return
  }
  func.func @transform_0(%arg0: i32) -> (i32, i32) {
    %c0_i32 = arith.constant 0 : i32
    %c0_i32_0 = arith.constant 0 : i32
    return %arg0, %c0_i32 : i32, i32
  }
  func.func @transform_1(%arg0: i32) -> (i32, i32) {
    %c0_i32 = arith.constant 0 : i32
    %c0_i32_0 = arith.constant 0 : i32
    return %arg0, %c0_i32 : i32, i32
  }
}

</mosaic_0001>

<llo_original>
// kernel: tpu_custom_call.1
$region0: #{tpu_custom_call.1}
  #allocation0 [shape = 'u32[]', space=smem, size = 0x4, offset = 0x4, fixed_abs, tag = 'smem constant byte address 0x4 - core index']
  #allocation1 [shape = 'u32[144,128]{1,0:T(1,128)}', space=vmem, size = 0x12000, scoped, tag = 'internal scratch']
  %s0 = inlined_call_operand.hbm [shape: f32[64,128], index: 0, kind: input, shape index: {}]
  %s1 = inlined_call_operand.hbm [shape: f32[8,128], index: 1, kind: output, shape index: {}]
  %s2 = sld [smem:[#allocation0]]
  $region18: #{tpu_custom_call.1} parent=0
    _
  %s4 = ssub.s32 1, %s2
  %s5 = scalar_select 0, %s4, %s2
  $region1: #{tpu_custom_call.1} parent=0
    #allocation2 [shape = 'u8[4096]{0}', space=vmem, size = 0x1000, scoped, tag = 'input window, operand 0, single buffered']
    #allocation3 [shape = 's32[1]{0}', space=sflag, size = 0x4, scoped, tag = 'scoped memory for tpu_custom_call.1']
    #allocation4 [shape = 's32[1]{0}', space=sflag, size = 0x4, scoped, tag = 'scoped memory for tpu_custom_call.1']
    #allocation5 [shape = 'u8[4096]{0}', space=vmem, size = 0x1000, scoped, tag = 'output window, operand 0, single buffered']
    %6 = vsyncpa [#allocation3], 0
    %7 = vsyncpa [#allocation4], 0
    // Predicated region
    $region2: #{tpu_custom_call.1} parent=1 // pred_check
      _
    $region3: #{tpu_custom_call.1} parent=1 // pred_check_branch
      %9 = sbr.rel (0) target = $region5
    $region4: #{tpu_custom_call.1} parent=1 // pred_region
      %s11 = ssub.s32 128, 128
      %12 = vsyncadd [#allocation3], %s11
      %s14 = sshll.u32 [#allocation2], 4
      %s15 = int_to_ptr.vmem [resolvable:$true] %s14
      %17 = dma.hbm_to_vmem [thread:$0]  %s0, 128, %s15, [#allocation3]
    $region5: #{tpu_custom_call.1} parent=1 // pred_fallthru
      _
    // Predicated region
    $region6: #{tpu_custom_call.1} parent=1 // pred_check
      _
    $region7: #{tpu_custom_call.1} parent=1 // pred_check_branch
      %19 = sbr.rel (0) target = $region9
    $region8: #{tpu_custom_call.1} parent=1 // pred_region
      %20 = dma.done [#allocation3], 128
    $region9: #{tpu_custom_call.1} parent=1 // pred_fallthru
      _
    %v21 = vld [vmem:[#allocation2] sm:$0xff]
    %v22 = vmul.f32 %v21, 0.088388346
    %23 = vst [vmem:[#allocation5] sm:$0xff] %v22
    // Predicated region
    $region10: #{tpu_custom_call.1} parent=1 // pred_check
      _
    $region11: #{tpu_custom_call.1} parent=1 // pred_check_branch
      %25 = sbr.rel (0) target = $region13
    $region12: #{tpu_custom_call.1} parent=1 // pred_region
      %s27 = ssub.s32 128, 128
      %28 = vsyncadd [#allocation4], %s27
      %s30 = sshll.u32 [#allocation5], 4
      %s31 = int_to_ptr.vmem [resolvable:$true] %s30
      %33 = dma.vmem_to_hbm [thread:$0]  %s31, 128, %s1, [#allocation4]
    $region13: #{tpu_custom_call.1} parent=1 // pred_fallthru
      _
    // Predicated region
    $region14: #{tpu_custom_call.1} parent=1 // pred_check
      _
    $region15: #{tpu_custom_call.1} parent=1 // pred_check_branch
      %35 = sbr.rel (0) target = $region17
    $region16: #{tpu_custom_call.1} parent=1 // pred_region
      %36 = dma.done [#allocation4], 128
    $region17: #{tpu_custom_call.1} parent=1 // pred_fallthru
      _
    %37 = vsyncpa [#allocation3], 1
    %38 = vsyncpa [#allocation4], 1

</llo_original>
